<compile_context>
chip_gen: v7x
topology: tpu7x:2x2x1
jax: 0.10.0
libtpu: 0.0.40
codegen_flags: <defaults>
</compile_context>

<pallas_src>
import jax
import jax.numpy as jnp
from jax.experimental import pallas as pl
from jax.experimental.pallas import tpu as pltpu


def _round_up(v, m):
    return ((v + m - 1) // m) * m


def _cdiv(a, b):
    return (a + b - 1) // b


def _kmeans_linear_kernel(x_ref, c_ref, o_ref):
    # x_ref: (tile_n, D)   c_ref: (D, tile_k) pre-normalized, pre-transposed
    # o_ref: (tile_n, tile_k) f32
    x = x_ref[...]

    # Cosine-similarity numerator on the MXU (canonical (M,K)x(K,N) shape;
    # K_pad on lanes of both the classifier tile and the output tile).
    s = jnp.dot(x, c_ref[...], preferred_element_type=jnp.float32)

    # Per-row inverse L2 norm of x; reduction in f32 even for bf16 inputs,
    # rsqrt goes to the EUP slot.
    xf = x.astype(jnp.float32)
    inv_x = jax.lax.rsqrt(jnp.sum(xf * xf, axis=1, keepdims=True))

    o_ref[...] = (s * inv_x).astype(o_ref.dtype)


def _vmem_limit_bytes():
    """Generation-aware scoped-VMEM limit (also used to size tiles).
    v7x: 64 MiB physical per TC -> stay <= ~40 MiB.
    v5e/v6e: 128 MiB physical -> use ~100 MiB."""
    try:
        cap = int(pltpu.get_tpu_info().vmem_capacity_bytes)
    except Exception:
        cap = 0
    if cap <= 0:
        cap = 64 * 1024 * 1024  # conservative fallback (v7x-sized)
    if cap <= 64 * 1024 * 1024:
        return 40 * 1024 * 1024
    return 100 * 1024 * 1024


def _choose_tiles(n_rows, d, k_pad, budget, x_bytes, c_bytes):
    """Pick (tile_n, tile_k, resident_classifier).  Prefer a fully VMEM-
    resident (single-buffered) classifier; fall back to streaming (D, tile_k)
    classifier blocks along a K grid axis when K is too large for that."""
    out_bytes = 4  # f32 output tiles

    def max_rows(tile_k, c_bufs):
        fixed = c_bufs * tile_k * d * c_bytes
        per_row = 2 * (d * x_bytes + tile_k * out_bytes)  # double-buffered x + out
        return (budget - fixed) // per_row

    tile_k = k_pad
    if k_pad > 128 and max_rows(k_pad, 1) < 256:
        # Resident classifier would crush the row tile -> K-tile it instead.
        while tile_k > 128 and max_rows(tile_k, 2) < 256:
            tile_k = _round_up(tile_k // 2, 128)
    resident = tile_k == k_pad
    rows = max(8, max_rows(tile_k, 1 if resident else 2))

    if min(rows, 2048) >= n_rows:
        tile_n = n_rows  # single full-extent row block (no (8,128) constraint)
    else:
        tile_n = max(8, (min(rows, 2048) // 8) * 8)

    # v7x megacore: give the "parallel" N axis >= 2 steps for large N so both
    # TensorCores get work.
    if n_rows > 1024 and tile_n >= n_rows:
        tile_n = _round_up(_cdiv(n_rows, 2), 8)
    return tile_n, tile_k, resident


def kmeans_linear_forward(x, classifier, use_bf16_matmul=False):
    """x: (N, D), classifier: (K, D)  ->  (N, K) cosine similarities.

    Matches KMeansLinear.forward: row-normalize both operands, then x @ c.T.
    """
    N, D = x.shape
    K, D2 = classifier.shape
    assert D == D2

    compute_dtype = jnp.bfloat16 if use_bf16_matmul else jnp.float32
    x_bytes = jnp.dtype(compute_dtype).itemsize
    c_bytes = x_bytes

    # Lane-dense output: pad the cluster dim to a multiple of 128.
    K_pad = _round_up(max(K, 128), 128)

    vmem_limit = _vmem_limit_bytes()
    budget = vmem_limit - 2 * 1024 * 1024  # headroom for compiler scratch
    tile_n, tile_k, resident_c = _choose_tiles(N, D, K_pad, budget,
                                               x_bytes, c_bytes)
    grid_n = _cdiv(N, tile_n)
    grid_k = _cdiv(K_pad, tile_k)

    # Classifier: normalize rows once (exact parity with
    # `c / c.norm(2, dim=1, keepdim=True)` -- no eps, empty clusters NaN just
    # like the PyTorch module), then store transposed + zero-padded as
    # (D, K_pad).  Padded columns are 0 -> padded outputs are exactly 0.
    c_f32 = classifier.astype(jnp.float32)
    c_n = c_f32 / jnp.sqrt(jnp.sum(c_f32 * c_f32, axis=1, keepdims=True))
    c_t = jnp.zeros((D, K_pad), compute_dtype).at[:, :K].set(
        c_n.T.astype(compute_dtype))

    if x.dtype != compute_dtype:
        x = x.astype(compute_dtype)

    cost = pl.CostEstimate(
        flops=2 * N * D * K_pad + 3 * N * D,
        transcendentals=N * grid_k,
        bytes_accessed=(N * D * x_bytes
                        + (grid_n if grid_k > 1 else 1) * K_pad * D * c_bytes
                        + N * K_pad * 4),
    )

    x_spec = pl.BlockSpec((tile_n, D), lambda i, j: (i, 0))
    out_spec = pl.BlockSpec((tile_n, tile_k), lambda i, j: (i, j))

    def run(single_buffer_c):
        if single_buffer_c:
            # Resident classifier block: one VMEM buffer instead of two.
            c_spec = pl.BlockSpec((D, tile_k), lambda i, j: (0, j),
                                  pipeline_mode=pl.Buffered(1))
        else:
            c_spec = pl.BlockSpec((D, tile_k), lambda i, j: (0, j))
        return pl.pallas_call(
            _kmeans_linear_kernel,
            out_shape=jax.ShapeDtypeStruct((N, K_pad), jnp.float32),
            grid_spec=pl.GridSpec(
                grid=(grid_n, grid_k),
                in_specs=[x_spec, c_spec],
                out_specs=out_spec,
            ),
            compiler_params=pltpu.CompilerParams(
                dimension_semantics=("parallel", "parallel"),
                vmem_limit_bytes=vmem_limit,
            ),
            cost_estimate=cost,
        )(x, c_t)

    if resident_c:
        try:
            out = run(single_buffer_c=True)
        except Exception:
            # Fallback for JAX builds where pipeline_mode=pl.Buffered(1) is
            # not supported on the TPU pallas_call pipeline.
            out = run(single_buffer_c=False)
    else:
        out = run(single_buffer_c=False)

    return out if K == K_pad else out[:, :K]


def init_classifier(train_a, train_val_feats, num_clusters):
    """Deterministic parameter construction matching KMeansLinear.__init__:
    per-cluster mean of training features (plain-JAX glue, not a kernel)."""
    clusters = []
    for i in range(num_clusters):
        mask = (train_a == i).astype(train_val_feats.dtype)
        cnt = jnp.maximum(jnp.sum(mask), 1.0)
        clusters.append(jnp.sum(train_val_feats * mask[:, None], axis=0) / cnt)
    return jnp.stack(clusters)  # (num_clusters, D)


if __name__ == "__main__":
    key = jax.random.PRNGKey(0)
    k1, k2, k3 = jax.random.split(key, 3)

    # Small shapes consistent with the module: batch N, feature dim D,
    # num_clusters K, M "training" features used to build the parameter.
    N, D, K, M = 8, 32, 4, 16

    train_val_feats = jax.random.normal(k1, (M, D), dtype=jnp.float32)
    train_a = jnp.arange(M, dtype=jnp.int32) % K  # assignments 0..K-1
    classifier = init_classifier(train_a, train_val_feats, K)

    x = jax.random.normal(k2, (N, D), dtype=jnp.float32)

    out = kmeans_linear_forward(x, classifier)
    jax.block_until_ready(out)

    # Pure-JAX reference of the PyTorch semantics.
    def ref_fn(xx, cc):
        c_ref = cc / jnp.linalg.norm(cc, axis=1, keepdims=True)
        x_ref = xx / jnp.linalg.norm(xx, axis=1, keepdims=True)
        return x_ref @ c_ref.T

    ref = ref_fn(x, classifier)
    assert out.shape == (N, K)
    assert jnp.allclose(out, ref, atol=1e-5, rtol=1e-5), float(
        jnp.max(jnp.abs(out - ref)))

    # Ragged-N case (no wrapper-side pad of x; full-extent row block).
    N2 = 13
    x2 = jax.random.normal(k3, (N2, D), dtype=jnp.float32)
    out2 = kmeans_linear_forward(x2, classifier)
    jax.block_until_ready(out2)
    ref2 = ref_fn(x2, classifier)
    assert out2.shape == (N2, K)
    assert jnp.allclose(out2, ref2, atol=1e-5, rtol=1e-5), float(
        jnp.max(jnp.abs(out2 - ref2)))

    print("KERNEL_OK")
</pallas_src>

<mosaic_0001>
module attributes {stable_mosaic.version = 11 : i64} {
  func.func @_kmeans_linear_kernel(%arg0: i32, %arg1: i32, %arg2: memref<8x32xf32, #tpu.memory_space<vmem>>, %arg3: memref<32x128xf32, #tpu.memory_space<vmem>>, %arg4: memref<8x128xf32, #tpu.memory_space<vmem>>) attributes {dimension_semantics = [#tpu.dimension_semantics<parallel>, #tpu.dimension_semantics<parallel>], iteration_bounds = array<i64: 1, 1>, scalar_prefetch = 0 : i64, scratch_operands = 0 : i64, tpu.core_type = #tpu.core_type<tc>, window_params = [{transform_indices = @transform_0, window_bounds = array<i64: 8, 32>}, {pipeline_mode = #tpu.pipeline_mode<synchronous>, transform_indices = @transform_1, window_bounds = array<i64: 32, 128>}, {transform_indices = @transform_2, window_bounds = array<i64: 8, 128>}]} {
    %c0 = arith.constant 0 : index
    %c0_0 = arith.constant 0 : index
    %0 = vector.load %arg2[%c0, %c0_0] : memref<8x32xf32, #tpu.memory_space<vmem>>, vector<8x32xf32>
    %c0_1 = arith.constant 0 : index
    %c0_2 = arith.constant 0 : index
    %1 = vector.load %arg3[%c0_1, %c0_2] : memref<32x128xf32, #tpu.memory_space<vmem>>, vector<32x128xf32>
    %cst = arith.constant dense<0.000000e+00> : vector<8x128xf32>
    %2 = tpu.matmul %0, %1, %cst {dimension_numbers = #tpu.dot_dimension_numbers<[1], [0], [0], [1], [0, 0, 1, 1], [], []>} : vector<8x32xf32>, vector<32x128xf32>, vector<8x128xf32> -> vector<8x128xf32>
    %3 = arith.mulf %0, %0 : vector<8x32xf32>
    %cst_3 = arith.constant dense<0.000000e+00> : vector<8xf32>
    %4 = vector.multi_reduction <add>, %3, %cst_3 [1] : vector<8x32xf32> to vector<8xf32>
    %5 = vector.shape_cast %4 : vector<8xf32> to vector<8x1xf32>
    %6 = math.rsqrt %5 : vector<8x1xf32>
    %7 = vector.broadcast %6 : vector<8x1xf32> to vector<8x128xf32>
    %8 = arith.mulf %2, %7 : vector<8x128xf32>
    %c0_4 = arith.constant 0 : index
    %c0_5 = arith.constant 0 : index
    %9 = vector.load %arg4[%c0_4, %c0_5] : memref<8x128xf32, #tpu.memory_space<vmem>>, vector<8x128xf32>
    tpu.vector_store %arg4[%c0_4, %c0_5], %8 {strides = array<i32>} : memref<8x128xf32, #tpu.memory_space<vmem>>, vector<8x128xf32>,
    return
  }
  func.func @transform_0(%arg0: i32, %arg1: i32) -> (i32, i32) {
    %c0_i32 = arith.constant 0 : i32
    %c0_i32_0 = arith.constant 0 : i32
    return %arg0, %c0_i32 : i32, i32
  }
  func.func @transform_1(%arg0: i32, %arg1: i32) -> (i32, i32) {
    %c0_i32 = arith.constant 0 : i32
    %c0_i32_0 = arith.constant 0 : i32
    return %c0_i32, %arg1 : i32, i32
  }
  func.func @transform_2(%arg0: i32, %arg1: i32) -> (i32, i32) {
    %c0_i32 = arith.constant 0 : i32
    return %arg0, %arg1 : i32, i32
  }
}

module attributes {stable_mosaic.version = 11 : i64} {
  func.func @_kmeans_linear_kernel(%arg0: i32, %arg1: i32, %arg2: memref<8x32xf32, #tpu.memory_space<vmem>>, %arg3: memref<32x128xf32, #tpu.memory_space<vmem>>, %arg4: memref<8x128xf32, #tpu.memory_space<vmem>>) attributes {dimension_semantics = [#tpu.dimension_semantics<parallel>, #tpu.dimension_semantics<parallel>], iteration_bounds = array<i64: 1, 1>, scalar_prefetch = 0 : i64, scratch_operands = 0 : i64, tpu.core_type = #tpu.core_type<tc>, window_params = [{transform_indices = @transform_0, window_bounds = array<i64: 8, 32>}, {transform_indices = @transform_1, window_bounds = array<i64: 32, 128>}, {transform_indices = @transform_2, window_bounds = array<i64: 8, 128>}]} {
    %c0 = arith.constant 0 : index
    %c0_0 = arith.constant 0 : index
    %0 = vector.load %arg2[%c0, %c0_0] : memref<8x32xf32, #tpu.memory_space<vmem>>, vector<8x32xf32>
    %c0_1 = arith.constant 0 : index
    %c0_2 = arith.constant 0 : index
    %1 = vector.load %arg3[%c0_1, %c0_2] : memref<32x128xf32, #tpu.memory_space<vmem>>, vector<32x128xf32>
    %cst = arith.constant dense<0.000000e+00> : vector<8x128xf32>
    %2 = tpu.matmul %0, %1, %cst {dimension_numbers = #tpu.dot_dimension_numbers<[1], [0], [0], [1], [0, 0, 1, 1], [], []>} : vector<8x32xf32>, vector<32x128xf32>, vector<8x128xf32> -> vector<8x128xf32>
    %3 = arith.mulf %0, %0 : vector<8x32xf32>
    %cst_3 = arith.constant dense<0.000000e+00> : vector<8xf32>
    %4 = vector.multi_reduction <add>, %3, %cst_3 [1] : vector<8x32xf32> to vector<8xf32>
    %5 = vector.shape_cast %4 : vector<8xf32> to vector<8x1xf32>
    %6 = math.rsqrt %5 : vector<8x1xf32>
    %7 = vector.broadcast %6 : vector<8x1xf32> to vector<8x128xf32>
    %8 = arith.mulf %2, %7 : vector<8x128xf32>
    %c0_4 = arith.constant 0 : index
    %c0_5 = arith.constant 0 : index
    %9 = vector.load %arg4[%c0_4, %c0_5] : memref<8x128xf32, #tpu.memory_space<vmem>>, vector<8x128xf32>
    tpu.vector_store %arg4[%c0_4, %c0_5], %8 {strides = array<i32>} : memref<8x128xf32, #tpu.memory_space<vmem>>, vector<8x128xf32>,
    return
  }
  func.func @transform_0(%arg0: i32, %arg1: i32) -> (i32, i32) {
    %c0_i32 = arith.constant 0 : i32
    %c0_i32_0 = arith.constant 0 : i32
    return %arg0, %c0_i32 : i32, i32
  }
  func.func @transform_1(%arg0: i32, %arg1: i32) -> (i32, i32) {
    %c0_i32 = arith.constant 0 : i32
    %c0_i32_0 = arith.constant 0 : i32
    return %c0_i32, %arg1 : i32, i32
  }
  func.func @transform_2(%arg0: i32, %arg1: i32) -> (i32, i32) {
    %c0_i32 = arith.constant 0 : i32
    return %arg0, %arg1 : i32, i32
  }
}

</mosaic_0001>

<llo_original>
// kernel: tpu_custom_call.1
$region0: #{tpu_custom_call.1}
  #allocation0 [shape = 'u32[]', space=smem, size = 0x4, offset = 0x4, fixed_abs, tag = 'smem constant byte address 0x4 - core index']
  #allocation1 [shape = 'u32[144,128]{1,0:T(1,128)}', space=vmem, size = 0x12000, scoped, tag = 'internal scratch']
  %s0 = inlined_call_operand.hbm [shape: f32[8,32], index: 0, kind: input, shape index: {}]
  %s1 = inlined_call_operand.hbm [shape: f32[32,128], index: 1, kind: input, shape index: {}]
  %s2 = inlined_call_operand.hbm [shape: f32[8,128], index: 2, kind: output, shape index: {}]
  %s3 = sld [smem:[#allocation0]]
  $region26: #{tpu_custom_call.1} parent=0
    _
  %s5 = ssub.s32 1, %s3
  %s6 = scalar_select 0, %s5, %s3
  $region1: #{tpu_custom_call.1} parent=0
    #allocation2 [shape = 'u8[4096]{0}', space=vmem, size = 0x1000, scoped, tag = 'input window, operand 0, single buffered']
    #allocation3 [shape = 's32[1]{0}', space=sflag, size = 0x4, scoped, tag = 'scoped memory for tpu_custom_call.1']
    #allocation4 [shape = 's32[1]{0}', space=sflag, size = 0x4, scoped, tag = 'scoped memory for tpu_custom_call.1']
    #allocation5 [shape = 'u8[16384]{0}', space=vmem, size = 0x4000, scoped, tag = 'input window, operand 1, single buffered']
    #allocation6 [shape = 's32[1]{0}', space=sflag, size = 0x4, scoped, tag = 'scoped memory for tpu_custom_call.1']
    #allocation7 [shape = 'u8[4096]{0}', space=vmem, size = 0x1000, scoped, tag = 'output window, operand 0, single buffered']
    %7 = vsyncpa [#allocation3], 0
    %8 = vsyncpa [#allocation6], 0
    %9 = vsyncpa [#allocation4], 0
    // Predicated region
    $region2: #{tpu_custom_call.1} parent=1 // pred_check
      _
    $region3: #{tpu_custom_call.1} parent=1 // pred_check_branch
      %11 = sbr.rel (0) target = $region5
    $region4: #{tpu_custom_call.1} parent=1 // pred_region
      %s13 = ssub.s32 128, 128
      %14 = vsyncadd [#allocation3], %s13
      %s16 = sshll.u32 [#allocation2], 4
      %s17 = int_to_ptr.vmem [resolvable:$true] %s16
      %19 = dma.hbm_to_vmem [thread:$0]  %s0, 128, %s17, [#allocation3]
    $region5: #{tpu_custom_call.1} parent=1 // pred_fallthru
      _
    // Predicated region
    $region6: #{tpu_custom_call.1} parent=1 // pred_check
      _
    $region7: #{tpu_custom_call.1} parent=1 // pred_check_branch
      %21 = sbr.rel (0) target = $region9
    $region8: #{tpu_custom_call.1} parent=1 // pred_region
      %s23 = ssub.s32 512, 512
      %24 = vsyncadd [#allocation6], %s23
      %s25 = sshll.u32 [#allocation5], 4
      %s26 = int_to_ptr.vmem [resolvable:$true] %s25
      %31 = dma.hbm_to_vmem [thread:$0]  %s1, 512, %s26, [#allocation6], 128, 128, 8
    $region9: #{tpu_custom_call.1} parent=1 // pred_fallthru
      _
    // Predicated region
    $region10: #{tpu_custom_call.1} parent=1 // pred_check
      _
    $region11: #{tpu_custom_call.1} parent=1 // pred_check_branch
      %33 = sbr.rel (0) target = $region13
    $region12: #{tpu_custom_call.1} parent=1 // pred_region
      %34 = dma.done [#allocation3], 128
    $region13: #{tpu_custom_call.1} parent=1 // pred_fallthru
      _
    // Predicated region
    $region14: #{tpu_custom_call.1} parent=1 // pred_check
      _
    $region15: #{tpu_custom_call.1} parent=1 // pred_check_branch
      %36 = sbr.rel (0) target = $region17
    $region16: #{tpu_custom_call.1} parent=1 // pred_region
      %37 = dma.done [#allocation6], 512
    $region17: #{tpu_custom_call.1} parent=1 // pred_fallthru
      _
    %v38 = vld [vmem:[#allocation2] sm:$0xff]
    %v39 = vld [vmem:[#allocation5] sm:$0xff]
    %v40 = vld [vmem:[#allocation5 + $0x8] sm:$0xff]
    %v41 = vld [vmem:[#allocation5 + $0x10] sm:$0xff]
    %v42 = vld [vmem:[#allocation5 + $0x18] sm:$0xff]
    %vm43 = vcmask 261120
    %v45 = vsel %vm43, %v38, 0
    %47 = vmatprep.subr.mxu0 0.0
    %48 = vmatpush1.msra.mxu0 %v39
    %49 = vmatprep.subr.mxu0 0.0
    %50 = vmatpush1.msra.mxu0 %v40
    %51 = vmatprep.subr.mxu0 0.0
    %52 = vmatpush1.msra.mxu0 %v41
    %53 = vmatprep.subr.mxu0 0.0
    %54 = vmatpush1.msra.mxu0 %v42
    %55 = vmatprep.subr.mxu0 0.0
    %56 = vmatpush1.msra.mxu0 0.0
    %57 = vmatprep.subr.mxu0 0.0
    %58 = vmatpush1.msra.mxu0 0.0
    %59 = vmatprep.subr.mxu0 0.0
    %60 = vmatpush1.msra.mxu0 0.0
    %61 = vmatprep.subr.mxu0 0.0
    %62 = vmatpush1.msra.mxu0 0.0
    %63 = vmatprep.subr.mxu0 0.0
    %64 = vmatpush1.msra.mxu0 0.0
    %65 = vmatprep.subr.mxu0 0.0
    %66 = vmatpush1.msra.mxu0 0.0
    %67 = vmatprep.subr.mxu0 0.0
    %68 = vmatpush1.msra.mxu0 0.0
    %69 = vmatprep.subr.mxu0 0.0
    %70 = vmatpush1.msra.mxu0 0.0
    %71 = vmatprep.subr.mxu0 0.0
    %72 = vmatpush1.msra.mxu0 0.0
    %73 = vmatprep.subr.mxu0 0.0
    %74 = vmatpush1.msra.mxu0 0.0
    %75 = vmatprep.subr.mxu0 0.0
    %76 = vmatpush1.msra.mxu0 0.0
    %77 = vmatprep.subr.mxu0 0.0
    %78 = vmatpush1.msra.mxu0 0.0
    %79 = vmatprep.subr.mxu0 0.0
    %80 = vmatpush1.msra.mxu0 0.0
    %81 = vmatprep.subr.mxu0 0.0
    %82 = vmatpush1.msra.mxu0 0.0
    %83 = vmatprep.subr.mxu0 0.0
    %84 = vmatpush1.msra.mxu0 0.0
    %85 = vmatprep.subr.mxu0 0.0
    %86 = vmatpush1.msra.mxu0 0.0
    %87 = vmatprep.subr.mxu0 0.0
    %88 = vmatpush1.msra.mxu0 0.0
    %89 = vmatprep.subr.mxu0 0.0
    %90 = vmatpush1.msra.mxu0 0.0
    %91 = vmatprep.subr.mxu0 0.0
    %92 = vmatpush1.msra.mxu0 0.0
    %93 = vmatprep.subr.mxu0 0.0
    %94 = vmatpush1.msra.mxu0 0.0
    %95 = vmatprep.subr.mxu0 0.0
    %96 = vmatpush1.msra.mxu0 0.0
    %97 = vmatprep.subr.mxu0 0.0
    %98 = vmatpush1.msra.mxu0 0.0
    %99 = vmatprep.subr.mxu0 0.0
    %100 = vmatpush1.msra.mxu0 0.0
    %101 = vmatprep.subr.mxu0 0.0
    %102 = vmatpush1.msra.mxu0 0.0
    %103 = vmatprep.subr.mxu0 0.0
    %104 = vmatpush1.msra.mxu0 0.0
    %105 = vmatprep.subr.mxu0 0.0
    %106 = vmatpush1.msra.mxu0 0.0
    %107 = vmatprep.subr.mxu0 0.0
    %108 = vmatpush1.msra.mxu0 0.0
    %109 = vmatprep.subr.mxu0 0.0
    %110 = vmatpush1.msra.mxu0 0.0
    %111 = vmatprep.mubr.f32.mxu0 0.0
    %112 = vmatmul.mubr.f32.gmra.mrb[0].mxu0 %v45
    %v113 = vpop.f32.mrb[0].mxu0
    %v114 = vadd.f32 0.0, %v113
    %v115 = vpop.f32.mrb[0].mxu0
    %116 = vdwg.mxu0
    %v117 = vmul.f32 %v38, %v38
    %v118 = vsel %vm43, %v117, 0.0
    %119 = vadd.xlane.f32.xlu0 %v118
    %v120 = vpop.xlane.xlu0 %119
    %v121 = vrsqrt.pop %v120
    %v122 = vmul.f32 %v114, %v121
    %123 = vst [vmem:[#allocation7] sm:$0xff] %v122
    // Predicated region
    $region18: #{tpu_custom_call.1} parent=1 // pred_check
      _
    $region19: #{tpu_custom_call.1} parent=1 // pred_check_branch
      %125 = sbr.rel (0) target = $region21
    $region20: #{tpu_custom_call.1} parent=1 // pred_region
      %s127 = ssub.s32 128, 128
      %128 = vsyncadd [#allocation4], %s127
      %s130 = sshll.u32 [#allocation7], 4
      %s131 = int_to_ptr.vmem [resolvable:$true] %s130
      %133 = dma.vmem_to_hbm [thread:$0]  %s131, 128, %s2, [#allocation4]
    $region21: #{tpu_custom_call.1} parent=1 // pred_fallthru
      _
    // Predicated region
    $region22: #{tpu_custom_call.1} parent=1 // pred_check
      _
    $region23: #{tpu_custom_call.1} parent=1 // pred_check_branch
      %135 = sbr.rel (0) target = $region25
    $region24: #{tpu_custom_call.1} parent=1 // pred_region
      %136 = dma.done [#allocation4], 128
    $region25: #{tpu_custom_call.1} parent=1 // pred_fallthru
      _
    %137 = vsyncpa [#allocation3], 1
    %138 = vsyncpa [#allocation6], 1
    %139 = vsyncpa [#allocation4], 1

// kernel: tpu_custom_call.1
$region0: #{tpu_custom_call.1}
  #allocation0 [shape = 'u32[]', space=smem, size = 0x4, offset = 0x4, fixed_abs, tag = 'smem constant byte address 0x4 - core index']
  #allocation1 [shape = 'u32[144,128]{1,0:T(1,128)}', space=vmem, size = 0x12000, scoped, tag = 'internal scratch']
  %s0 = inlined_call_operand.hbm [shape: f32[8,32], index: 0, kind: input, shape index: {}]
  %s1 = inlined_call_operand.hbm [shape: f32[32,128], index: 1, kind: input, shape index: {}]
  %s2 = inlined_call_operand.hbm [shape: f32[8,128], index: 2, kind: output, shape index: {}]
  %s3 = sld [smem:[#allocation0]]
  $region26: #{tpu_custom_call.1} parent=0
    _
  %s5 = ssub.s32 1, %s3
  %s6 = scalar_select 0, %s5, %s3
  $region1: #{tpu_custom_call.1} parent=0
    #allocation2 [shape = 'u8[4096]{0}', space=vmem, size = 0x1000, scoped, tag = 'input window, operand 0, single buffered']
    #allocation3 [shape = 's32[1]{0}', space=sflag, size = 0x4, scoped, tag = 'scoped memory for tpu_custom_call.1']
    #allocation4 [shape = 's32[1]{0}', space=sflag, size = 0x4, scoped, tag = 'scoped memory for tpu_custom_call.1']
    #allocation5 [shape = 'u8[16384]{0}', space=vmem, size = 0x4000, scoped, tag = 'input window, operand 1, single buffered']
    #allocation6 [shape = 's32[1]{0}', space=sflag, size = 0x4, scoped, tag = 'scoped memory for tpu_custom_call.1']
    #allocation7 [shape = 'u8[4096]{0}', space=vmem, size = 0x1000, scoped, tag = 'output window, operand 0, single buffered']
    %7 = vsyncpa [#allocation3], 0
    %8 = vsyncpa [#allocation6], 0
    %9 = vsyncpa [#allocation4], 0
    // Predicated region
    $region2: #{tpu_custom_call.1} parent=1 // pred_check
      _
    $region3: #{tpu_custom_call.1} parent=1 // pred_check_branch
      %11 = sbr.rel (0) target = $region5
    $region4: #{tpu_custom_call.1} parent=1 // pred_region
      %s13 = ssub.s32 128, 128
      %14 = vsyncadd [#allocation3], %s13
      %s16 = sshll.u32 [#allocation2], 4
      %s17 = int_to_ptr.vmem [resolvable:$true] %s16
      %19 = dma.hbm_to_vmem [thread:$0]  %s0, 128, %s17, [#allocation3]
    $region5: #{tpu_custom_call.1} parent=1 // pred_fallthru
      _
    // Predicated region
    $region6: #{tpu_custom_call.1} parent=1 // pred_check
      _
    $region7: #{tpu_custom_call.1} parent=1 // pred_check_branch
      %21 = sbr.rel (0) target = $region9
    $region8: #{tpu_custom_call.1} parent=1 // pred_region
      %s23 = ssub.s32 512, 512
      %24 = vsyncadd [#allocation6], %s23
      %s25 = sshll.u32 [#allocation5], 4
      %s26 = int_to_ptr.vmem [resolvable:$true] %s25
      %31 = dma.hbm_to_vmem [thread:$0]  %s1, 512, %s26, [#allocation6], 128, 128, 8
    $region9: #{tpu_custom_call.1} parent=1 // pred_fallthru
      _
    // Predicated region
    $region10: #{tpu_custom_call.1} parent=1 // pred_check
      _
    $region11: #{tpu_custom_call.1} parent=1 // pred_check_branch
      %33 = sbr.rel (0) target = $region13
    $region12: #{tpu_custom_call.1} parent=1 // pred_region
      %34 = dma.done [#allocation3], 128
    $region13: #{tpu_custom_call.1} parent=1 // pred_fallthru
      _
    // Predicated region
    $region14: #{tpu_custom_call.1} parent=1 // pred_check
      _
    $region15: #{tpu_custom_call.1} parent=1 // pred_check_branch
      %36 = sbr.rel (0) target = $region17
    $region16: #{tpu_custom_call.1} parent=1 // pred_region
      %37 = dma.done [#allocation6], 512
    $region17: #{tpu_custom_call.1} parent=1 // pred_fallthru
      _
    %v38 = vld [vmem:[#allocation2] sm:$0xff]
    %v39 = vld [vmem:[#allocation5] sm:$0xff]
    %v40 = vld [vmem:[#allocation5 + $0x8] sm:$0xff]
    %v41 = vld [vmem:[#allocation5 + $0x10] sm:$0xff]
    %v42 = vld [vmem:[#allocation5 + $0x18] sm:$0xff]
    %vm43 = vcmask 261120
    %v45 = vsel %vm43, %v38, 0
    %47 = vmatprep.subr.mxu0 0.0
    %48 = vmatpush1.msra.mxu0 %v39
    %49 = vmatprep.subr.mxu0 0.0
    %50 = vmatpush1.msra.mxu0 %v40
    %51 = vmatprep.subr.mxu0 0.0
    %52 = vmatpush1.msra.mxu0 %v41
    %53 = vmatprep.subr.mxu0 0.0
    %54 = vmatpush1.msra.mxu0 %v42
    %55 = vmatprep.subr.mxu0 0.0
    %56 = vmatpush1.msra.mxu0 0.0
    %57 = vmatprep.subr.mxu0 0.0
    %58 = vmatpush1.msra.mxu0 0.0
    %59 = vmatprep.subr.mxu0 0.0
    %60 = vmatpush1.msra.mxu0 0.0
    %61 = vmatprep.subr.mxu0 0.0
    %62 = vmatpush1.msra.mxu0 0.0
    %63 = vmatprep.subr.mxu0 0.0
    %64 = vmatpush1.msra.mxu0 0.0
    %65 = vmatprep.subr.mxu0 0.0
    %66 = vmatpush1.msra.mxu0 0.0
    %67 = vmatprep.subr.mxu0 0.0
    %68 = vmatpush1.msra.mxu0 0.0
    %69 = vmatprep.subr.mxu0 0.0
    %70 = vmatpush1.msra.mxu0 0.0
    %71 = vmatprep.subr.mxu0 0.0
    %72 = vmatpush1.msra.mxu0 0.0
    %73 = vmatprep.subr.mxu0 0.0
    %74 = vmatpush1.msra.mxu0 0.0
    %75 = vmatprep.subr.mxu0 0.0
    %76 = vmatpush1.msra.mxu0 0.0
    %77 = vmatprep.subr.mxu0 0.0
    %78 = vmatpush1.msra.mxu0 0.0
    %79 = vmatprep.subr.mxu0 0.0
    %80 = vmatpush1.msra.mxu0 0.0
    %81 = vmatprep.subr.mxu0 0.0
    %82 = vmatpush1.msra.mxu0 0.0
    %83 = vmatprep.subr.mxu0 0.0
    %84 = vmatpush1.msra.mxu0 0.0
    %85 = vmatprep.subr.mxu0 0.0
    %86 = vmatpush1.msra.mxu0 0.0
    %87 = vmatprep.subr.mxu0 0.0
    %88 = vmatpush1.msra.mxu0 0.0
    %89 = vmatprep.subr.mxu0 0.0
    %90 = vmatpush1.msra.mxu0 0.0
    %91 = vmatprep.subr.mxu0 0.0
    %92 = vmatpush1.msra.mxu0 0.0
    %93 = vmatprep.subr.mxu0 0.0
    %94 = vmatpush1.msra.mxu0 0.0
    %95 = vmatprep.subr.mxu0 0.0
    %96 = vmatpush1.msra.mxu0 0.0
    %97 = vmatprep.subr.mxu0 0.0
    %98 = vmatpush1.msra.mxu0 0.0
    %99 = vmatprep.subr.mxu0 0.0
    %100 = vmatpush1.msra.mxu0 0.0
    %101 = vmatprep.subr.mxu0 0.0
    %102 = vmatpush1.msra.mxu0 0.0
    %103 = vmatprep.subr.mxu0 0.0
    %104 = vmatpush1.msra.mxu0 0.0
    %105 = vmatprep.subr.mxu0 0.0
    %106 = vmatpush1.msra.mxu0 0.0
    %107 = vmatprep.subr.mxu0 0.0
    %108 = vmatpush1.msra.mxu0 0.0
    %109 = vmatprep.subr.mxu0 0.0
    %110 = vmatpush1.msra.mxu0 0.0
    %111 = vmatprep.mubr.f32.mxu0 0.0
    %112 = vmatmul.mubr.f32.gmra.mrb[0].mxu0 %v45
    %v113 = vpop.f32.mrb[0].mxu0
    %v114 = vadd.f32 0.0, %v113
    %v115 = vpop.f32.mrb[0].mxu0
    %116 = vdwg.mxu0
    %v117 = vmul.f32 %v38, %v38
    %v118 = vsel %vm43, %v117, 0.0
    %119 = vadd.xlane.f32.xlu0 %v118
    %v120 = vpop.xlane.xlu0 %119
    %v121 = vrsqrt.pop %v120
    %v122 = vmul.f32 %v114, %v121
    %123 = vst [vmem:[#allocation7] sm:$0xff] %v122
    // Predicated region
    $region18: #{tpu_custom_call.1} parent=1 // pred_check
      _
    $region19: #{tpu_custom_call.1} parent=1 // pred_check_branch
      %125 = sbr.rel (0) target = $region21
    $region20: #{tpu_custom_call.1} parent=1 // pred_region
      %s127 = ssub.s32 128, 128
      %128 = vsyncadd [#allocation4], %s127
      %s130 = sshll.u32 [#allocation7], 4
      %s131 = int_to_ptr.vmem [resolvable:$true] %s130
      %133 = dma.vmem_to_hbm [thread:$0]  %s131, 128, %s2, [#allocation4]
    $region21: #{tpu_custom_call.1} parent=1 // pred_fallthru
      _
    // Predicated region
    $region22: #{tpu_custom_call.1} parent=1 // pred_check
      _
    $region23: #{tpu_custom_call.1} parent=1 // pred_check_branch
      %135 = sbr.rel (0) target = $region25
    $region24: #{tpu_custom_call.1} parent=1 // pred_region
      %136 = dma.done [#allocation4], 128
    $region25: #{tpu_custom_call.1} parent=1 // pred_fallthru
      _
    %137 = vsyncpa [#allocation3], 1
    %138 = vsyncpa [#allocation6], 1
    %139 = vsyncpa [#allocation4], 1

</llo_original>
